<compile_context>
chip_gen: v7x
topology: tpu7x:2x2x1
jax: 0.10.0
libtpu: 0.0.40
codegen_flags: <defaults>
</compile_context>

<pallas_src>
import functools

import jax
import jax.numpy as jnp
from jax.experimental import pallas as pl
from jax.experimental.pallas import tpu as pltpu


def _round_up(x, m):
    return (x + m - 1) // m * m


# ----------------------------------------------------------------------------
# Kernel 1 (fused): pairwise mask Intersection + IOU + per-mask area / coord
# sums, all from a single streaming pass over the int8 mask matrix.
# ----------------------------------------------------------------------------
def _pairwise_stats_kernel(m_ref, gxy_ref, inter_ref, iou_ref,
                           area_ref, sx_ref, sy_ref):
    k = pl.program_id(0)

    @pl.when(k == 0)
    def _init():
        inter_ref[...] = jnp.zeros_like(inter_ref)
        area_ref[...] = jnp.zeros_like(area_ref)
        sx_ref[...] = jnp.zeros_like(sx_ref)
        sy_ref[...] = jnp.zeros_like(sy_ref)

    m_bf = m_ref[...].astype(jnp.bfloat16)   # (N, tk), {0,1} exact in bf16
    m_f = m_bf.astype(jnp.float32)

    # Intersection Gram matrix: A · Aᵀ, contracting the lane (HW) axis of both
    # operands directly (MXU-native, no transpose/relayout), f32 accumulate.
    inter_ref[...] += jax.lax.dot_general(
        m_bf, m_bf, (((1,), (1,)), ((), ())),
        preferred_element_type=jnp.float32)

    # Per-mask area + coordinate sums (for argsort + mask_to_point centroids).
    px = gxy_ref[0:1, :]                     # (1, tk) pixel x (column)
    py = gxy_ref[1:2, :]                     # (1, tk) pixel y (row)
    area_ref[...] += jnp.sum(m_f, axis=1, keepdims=True)
    sx_ref[...] += jnp.sum(m_f * px, axis=1, keepdims=True)
    sy_ref[...] += jnp.sum(m_f * py, axis=1, keepdims=True)

    @pl.when(k == pl.num_programs(0) - 1)
    def _finalize():
        inter = inter_ref[...]
        n = inter.shape[0]
        # diag(A·Aᵀ) of {0,1} masks == per-mask area -> column-area row (1, N)
        # without any transpose or extra matmul.
        eye = (jax.lax.broadcasted_iota(jnp.int32, (n, n), 0)
               == jax.lax.broadcasted_iota(jnp.int32, (n, n), 1)
               ).astype(jnp.float32)
        area_row = jnp.sum(inter * eye, axis=0, keepdims=True)          # (1, N)
        union = area_ref[...] + area_row - inter
        iou_ref[...] = inter * pl.reciprocal(jnp.maximum(union, 1.0), approx=True)


def pairwise_and_stats(masks_i8, gx, gy, tk_target=8192):
    """masks_i8: (N, HW) int8 {0,1}; gx, gy: (1, HW) f32 pixel coordinates.

    Returns (intersection (N,N), IOU (N,N), area (N,1), sum_x (N,1), sum_y (N,1)).
    """
    N, HW = masks_i8.shape
    tk = min(tk_target, _round_up(HW, 128))
    HWp = _round_up(HW, tk)
    if HWp != HW:
        pad = HWp - HW
        masks_i8 = jnp.pad(masks_i8, ((0, 0), (0, pad)))
        gx = jnp.pad(gx, ((0, 0), (0, pad)))
        gy = jnp.pad(gy, ((0, 0), (0, pad)))
    gxy = jnp.concatenate([gx, gy], axis=0).astype(jnp.float32)          # (2, HWp)

    return pl.pallas_call(
        _pairwise_stats_kernel,
        out_shape=(jax.ShapeDtypeStruct((N, N), jnp.float32),
                   jax.ShapeDtypeStruct((N, N), jnp.float32),
                   jax.ShapeDtypeStruct((N, 1), jnp.float32),
                   jax.ShapeDtypeStruct((N, 1), jnp.float32),
                   jax.ShapeDtypeStruct((N, 1), jnp.float32)),
        grid_spec=pltpu.PrefetchScalarGridSpec(
            num_scalar_prefetch=0,
            grid=(HWp // tk,),
            in_specs=[pl.BlockSpec((N, tk), lambda k: (0, k)),
                      pl.BlockSpec((2, tk), lambda k: (0, k))],
            out_specs=(pl.BlockSpec((N, N), lambda k: (0, 0)),
                       pl.BlockSpec((N, N), lambda k: (0, 0)),
                       pl.BlockSpec((N, 1), lambda k: (0, 0)),
                       pl.BlockSpec((N, 1), lambda k: (0, 0)),
                       pl.BlockSpec((N, 1), lambda k: (0, 0)))),
        compiler_params=pltpu.CompilerParams(
            dimension_semantics=("arbitrary",)),
    )(masks_i8, gxy)


# ----------------------------------------------------------------------------
# Kernel 2: unproject per-pixel [x_ndc, y_ndc, depth, 1] points through a 4x4
# camera matrix (camera.unproject_points hot path).  Tiled over image rows;
# only depth is streamed — NDC coords and the homogeneous 1 are generated
# in-kernel from iota + program_id.  Camera matrix lives in SMEM.
# ----------------------------------------------------------------------------
def _unproject_kernel(mat_ref, d_ref, xo_ref, yo_ref, zo_ref, *, H, W, TR):
    r = pl.program_id(0)
    py = (r * TR + jax.lax.broadcasted_iota(jnp.int32, (TR, W), 0)
          ).astype(jnp.float32)
    px = jax.lax.broadcasted_iota(jnp.int32, (TR, W), 1).astype(jnp.float32)
    x = px * (2.0 / max(W - 1, 1)) - 1.0
    y = py * (2.0 / max(H - 1, 1)) - 1.0
    d = d_ref[...]                                           # (TR, W)

    rows = []
    for i in range(4):
        rows.append(mat_ref[i, 0] * x + mat_ref[i, 1] * y
                    + mat_ref[i, 2] * d + mat_ref[i, 3])
    w = rows[3]
    w = jnp.where(jnp.abs(w) < 1e-8, jnp.ones_like(w), w)
    inv_w = pl.reciprocal(w, approx=True)
    xo_ref[...] = rows[0] * inv_w
    yo_ref[...] = rows[1] * inv_w
    zo_ref[...] = rows[2] * inv_w


def unproject(cam_mat, depth_hw, target_elems=1 << 18):
    """cam_mat: (4,4) f32; depth_hw: (H, W) f32 -> xyz planes, each (H, W)."""
    H, W = depth_hw.shape
    TR = max(8, min(_round_up(H, 8), _round_up(max(target_elems // max(W, 1), 1), 8)))
    Hp = _round_up(H, TR)
    if Hp != H:
        depth_hw = jnp.pad(depth_hw, ((0, Hp - H), (0, 0)), constant_values=1.0)

    kernel = functools.partial(_unproject_kernel, H=H, W=W, TR=TR)
    xo, yo, zo = pl.pallas_call(
        kernel,
        out_shape=(jax.ShapeDtypeStruct((Hp, W), jnp.float32),
                   jax.ShapeDtypeStruct((Hp, W), jnp.float32),
                   jax.ShapeDtypeStruct((Hp, W), jnp.float32)),
        grid=(Hp // TR,),
        in_specs=[pl.BlockSpec(memory_space=pltpu.MemorySpace.SMEM),
                  pl.BlockSpec((TR, W), lambda r: (r, 0))],
        out_specs=(pl.BlockSpec((TR, W), lambda r: (r, 0)),
                   pl.BlockSpec((TR, W), lambda r: (r, 0)),
                   pl.BlockSpec((TR, W), lambda r: (r, 0))),
        compiler_params=pltpu.CompilerParams(
            dimension_semantics=("parallel",)),
    )(cam_mat.astype(jnp.float32), depth_hw)
    return xo[:H], yo[:H], zo[:H]


# ----------------------------------------------------------------------------
# Forward-pass emulation (glue in plain JAX)
# ----------------------------------------------------------------------------
if __name__ == "__main__":
    key = jax.random.PRNGKey(0)
    k1, k2, k3 = jax.random.split(key, 3)

    N, H, W = 8, 16, 16          # N candidate masks from "everything_prompt"
    HW = H * W

    # Synthetic FastSAM "everything" masks (bool, N x H x W).
    # TODO(synk): FastSAM inference / FastSAMPrompt point prompting are an
    # external neural model + host control flow, not reproducible as a kernel.
    masks = jax.random.uniform(k1, (N, H, W)) > 0.7
    depth = jax.random.uniform(k2, (1, 1, H, W), minval=0.5, maxval=2.0)  # NCHW
    cam_mat = (jnp.eye(4, dtype=jnp.float32)
               + 0.01 * jax.random.normal(k3, (4, 4), dtype=jnp.float32))

    # int8 {0,1} storage of the binary masks (exact, 4x less HBM than f32).
    masks_i8 = masks.reshape(N, HW).astype(jnp.int8)

    # pixel coordinate grids (x = column, y = row), matching torch.meshgrid('xy')
    ys, xs = jnp.meshgrid(jnp.arange(H, dtype=jnp.float32),
                          jnp.arange(W, dtype=jnp.float32), indexing="ij")
    gx = xs.reshape(1, HW)
    gy = ys.reshape(1, HW)

    # --- fused: pairwise Intersection/IOU + mask areas + coordinate sums ---
    inter, iou, area, sx, sy = pairwise_and_stats(masks_i8, gx, gy)
    area, sx, sy = area[:, 0], sx[:, 0], sy[:, 0]

    # ann = ann[argsort(sum(ann, (1,2)), descending=True)] — apply the
    # permutation to the small NxN / Nx1 kernel outputs instead of
    # re-streaming the mask array.
    order = jnp.argsort(-area)

    # self.memory_coords = [mask_to_point(ar) for ar in ann]  (centroids)
    safe = jnp.maximum(area, 1.0)
    cx = jnp.floor(sx / safe).astype(jnp.int32)
    cy = jnp.floor(sy / safe).astype(jnp.int32)
    memory_coords = jnp.stack([cx, cy], axis=-1)[order]
    # TODO(synk): mask_to_point's fallback (np.random resample when the centroid
    # lands off-mask) is host-side data-dependent randomness; not reproduced.

    # metric_utils.pairwise_segment_metric(ann, ann, 'Intersection'/'IOU')
    inter_sorted = inter[order][:, order]
    iou_sorted = iou[order][:, order]
    inter_over_i = inter_sorted / jnp.maximum(area[order].reshape(-1, 1), 1.0)

    # get_xy_depth(depth, from_ndc=True) -> camera.unproject_points(...) ->
    # self.memory = Pointclouds(points=xyz)
    xo, yo, zo = unproject(cam_mat, depth.reshape(H, W))
    xyz = jnp.stack([xo, yo, zo], axis=0).reshape(3, HW)   # lane-dense cloud
    # TODO(synk): RLE / COCO mask encoding and the pytorch3d Pointclouds/camera
    # objects are host-side Python with no Pallas equivalent.

    for t in (area, order, memory_coords, inter_sorted, iou_sorted,
              inter_over_i, xyz):
        jax.block_until_ready(t)
    print("KERNEL_OK")
</pallas_src>

<mosaic_0001>
module attributes {stable_mosaic.version = 11 : i64} {
  func.func @_pairwise_stats_kernel(%arg0: i32, %arg1: memref<8x256xi8, #tpu.memory_space<vmem>>, %arg2: memref<2x256xf32, #tpu.memory_space<vmem>>, %arg3: memref<8x8xf32, #tpu.memory_space<vmem>>, %arg4: memref<8x8xf32, #tpu.memory_space<vmem>>, %arg5: memref<8x1xf32, #tpu.memory_space<vmem>>, %arg6: memref<8x1xf32, #tpu.memory_space<vmem>>, %arg7: memref<8x1xf32, #tpu.memory_space<vmem>>) attributes {dimension_semantics = [#tpu.dimension_semantics<arbitrary>], iteration_bounds = array<i64: 1>, scalar_prefetch = 0 : i64, scratch_operands = 0 : i64, tpu.core_type = #tpu.core_type<tc>, window_params = [{transform_indices = @transform_0, window_bounds = array<i64: 8, 256>}, {transform_indices = @transform_1, window_bounds = array<i64: 2, 256>}, {pipeline_mode = #tpu.pipeline_mode<synchronous>, transform_indices = @transform_2, window_bounds = array<i64: 8, 8>}, {pipeline_mode = #tpu.pipeline_mode<synchronous>, transform_indices = @transform_3, window_bounds = array<i64: 8, 8>}, {pipeline_mode = #tpu.pipeline_mode<synchronous>, transform_indices = @transform_4, window_bounds = array<i64: 8, 1>}, {pipeline_mode = #tpu.pipeline_mode<synchronous>, transform_indices = @transform_5, window_bounds = array<i64: 8, 1>}, {pipeline_mode = #tpu.pipeline_mode<synchronous>, transform_indices = @transform_6, window_bounds = array<i64: 8, 1>}]} {
    %c0_i32 = arith.constant 0 : i32
    %0 = arith.cmpi eq, %arg0, %c0_i32 : i32
    %1 = arith.extui %0 : i1 to i32
    %c0_i32_0 = arith.constant 0 : i32
    %2 = arith.cmpi ne, %1, %c0_i32_0 : i32
    scf.if %2 {
      %cst_26 = arith.constant 0.000000e+00 : f32
      %34 = vector.broadcast %cst_26 : f32 to vector<8x8xf32>
      %c0_27 = arith.constant 0 : index
      %c0_28 = arith.constant 0 : index
      %35 = vector.load %arg3[%c0_27, %c0_28] : memref<8x8xf32, #tpu.memory_space<vmem>>, vector<8x8xf32>
      tpu.vector_store %arg3[%c0_27, %c0_28], %34 {strides = array<i32>} : memref<8x8xf32, #tpu.memory_space<vmem>>, vector<8x8xf32>,
      %cst_29 = arith.constant 0.000000e+00 : f32
      %36 = vector.broadcast %cst_29 : f32 to vector<8x1xf32>
      %c0_30 = arith.constant 0 : index
      %c0_31 = arith.constant 0 : index
      %37 = vector.load %arg5[%c0_30, %c0_31] : memref<8x1xf32, #tpu.memory_space<vmem>>, vector<8x1xf32>
      tpu.vector_store %arg5[%c0_30, %c0_31], %36 {strides = array<i32>} : memref<8x1xf32, #tpu.memory_space<vmem>>, vector<8x1xf32>,
      %cst_32 = arith.constant 0.000000e+00 : f32
      %38 = vector.broadcast %cst_32 : f32 to vector<8x1xf32>
      %c0_33 = arith.constant 0 : index
      %c0_34 = arith.constant 0 : index
      %39 = vector.load %arg6[%c0_33, %c0_34] : memref<8x1xf32, #tpu.memory_space<vmem>>, vector<8x1xf32>
      tpu.vector_store %arg6[%c0_33, %c0_34], %38 {strides = array<i32>} : memref<8x1xf32, #tpu.memory_space<vmem>>, vector<8x1xf32>,
      %cst_35 = arith.constant 0.000000e+00 : f32
      %40 = vector.broadcast %cst_35 : f32 to vector<8x1xf32>
      %c0_36 = arith.constant 0 : index
      %c0_37 = arith.constant 0 : index
      %41 = vector.load %arg7[%c0_36, %c0_37] : memref<8x1xf32, #tpu.memory_space<vmem>>, vector<8x1xf32>
      tpu.vector_store %arg7[%c0_36, %c0_37], %40 {strides = array<i32>} : memref<8x1xf32, #tpu.memory_space<vmem>>, vector<8x1xf32>,
    } else {
    }
    %c0 = arith.constant 0 : index
    %c0_1 = arith.constant 0 : index
    %3 = vector.load %arg1[%c0, %c0_1] : memref<8x256xi8, #tpu.memory_space<vmem>>, vector<8x256xi8>
    %4 = arith.sitofp %3 : vector<8x256xi8> to vector<8x256xbf16>
    %5 = arith.extf %4 : vector<8x256xbf16> to vector<8x256xf32>
    %c0_2 = arith.constant 0 : index
    %c0_3 = arith.constant 0 : index
    %6 = vector.load %arg3[%c0_2, %c0_3] : memref<8x8xf32, #tpu.memory_space<vmem>>, vector<8x8xf32>
    %cst = arith.constant dense<0.000000e+00> : vector<8x8xf32>
    %7 = tpu.matmul %4, %4, %cst {dimension_numbers = #tpu.dot_dimension_numbers<[1], [1], [0], [0], [0, 0, 1, 0], [], []>} : vector<8x256xbf16>, vector<8x256xbf16>, vector<8x8xf32> -> vector<8x8xf32>
    %8 = arith.addf %6, %7 : vector<8x8xf32>
    %c0_4 = arith.constant 0 : index
    %c0_5 = arith.constant 0 : index
    %9 = vector.load %arg3[%c0_4, %c0_5] : memref<8x8xf32, #tpu.memory_space<vmem>>, vector<8x8xf32>
    tpu.vector_store %arg3[%c0_4, %c0_5], %8 {strides = array<i32>} : memref<8x8xf32, #tpu.memory_space<vmem>>, vector<8x8xf32>,
    %c0_6 = arith.constant 0 : index
    %c0_7 = arith.constant 0 : index
    %10 = vector.load %arg2[%c0_6, %c0_7] : memref<2x256xf32, #tpu.memory_space<vmem>>, vector<1x256xf32>
    %c1 = arith.constant 1 : index
    %c0_8 = arith.constant 0 : index
    %11 = vector.load %arg2[%c1, %c0_8] : memref<2x256xf32, #tpu.memory_space<vmem>>, vector<1x256xf32>
    %c0_9 = arith.constant 0 : index
    %c0_10 = arith.constant 0 : index
    %12 = vector.load %arg5[%c0_9, %c0_10] : memref<8x1xf32, #tpu.memory_space<vmem>>, vector<8x1xf32>
    %cst_11 = arith.constant dense<0.000000e+00> : vector<8xf32>
    %13 = vector.multi_reduction <add>, %5, %cst_11 [1] : vector<8x256xf32> to vector<8xf32>
    %14 = vector.shape_cast %13 : vector<8xf32> to vector<8x1xf32>
    %15 = arith.addf %12, %14 : vector<8x1xf32>
    %c0_12 = arith.constant 0 : index
    %c0_13 = arith.constant 0 : index
    %16 = vector.load %arg5[%c0_12, %c0_13] : memref<8x1xf32, #tpu.memory_space<vmem>>, vector<8x1xf32>
    tpu.vector_store %arg5[%c0_12, %c0_13], %15 {strides = array<i32>} : memref<8x1xf32, #tpu.memory_space<vmem>>, vector<8x1xf32>,
    %c0_14 = arith.constant 0 : index
    %c0_15 = arith.constant 0 : index
    %17 = vector.load %arg6[%c0_14, %c0_15] : memref<8x1xf32, #tpu.memory_space<vmem>>, vector<8x1xf32>
    %18 = vector.broadcast %10 : vector<1x256xf32> to vector<8x256xf32>
    %19 = arith.mulf %5, %18 : vector<8x256xf32>
    %cst_16 = arith.constant dense<0.000000e+00> : vector<8xf32>
    %20 = vector.multi_reduction <add>, %19, %cst_16 [1] : vector<8x256xf32> to vector<8xf32>
    %21 = vector.shape_cast %20 : vector<8xf32> to vector<8x1xf32>
    %22 = arith.addf %17, %21 : vector<8x1xf32>
    %c0_17 = arith.constant 0 : index
    %c0_18 = arith.constant 0 : index
    %23 = vector.load %arg6[%c0_17, %c0_18] : memref<8x1xf32, #tpu.memory_space<vmem>>, vector<8x1xf32>
    tpu.vector_store %arg6[%c0_17, %c0_18], %22 {strides = array<i32>} : memref<8x1xf32, #tpu.memory_space<vmem>>, vector<8x1xf32>,
    %c0_19 = arith.constant 0 : index
    %c0_20 = arith.constant 0 : index
    %24 = vector.load %arg7[%c0_19, %c0_20] : memref<8x1xf32, #tpu.memory_space<vmem>>, vector<8x1xf32>
    %25 = vector.broadcast %11 : vector<1x256xf32> to vector<8x256xf32>
    %26 = arith.mulf %5, %25 : vector<8x256xf32>
    %cst_21 = arith.constant dense<0.000000e+00> : vector<8xf32>
    %27 = vector.multi_reduction <add>, %26, %cst_21 [1] : vector<8x256xf32> to vector<8xf32>
    %28 = vector.shape_cast %27 : vector<8xf32> to vector<8x1xf32>
    %29 = arith.addf %24, %28 : vector<8x1xf32>
    %c0_22 = arith.constant 0 : index
    %c0_23 = arith.constant 0 : index
    %30 = vector.load %arg7[%c0_22, %c0_23] : memref<8x1xf32, #tpu.memory_space<vmem>>, vector<8x1xf32>
    tpu.vector_store %arg7[%c0_22, %c0_23], %29 {strides = array<i32>} : memref<8x1xf32, #tpu.memory_space<vmem>>, vector<8x1xf32>,
    %c0_i32_24 = arith.constant 0 : i32
    %31 = arith.cmpi eq, %arg0, %c0_i32_24 : i32
    %32 = arith.extui %31 : i1 to i32
    %c0_i32_25 = arith.constant 0 : i32
    %33 = arith.cmpi ne, %32, %c0_i32_25 : i32
    scf.if %33 {
      %c0_26 = arith.constant 0 : index
      %c0_27 = arith.constant 0 : index
      %34 = vector.load %arg3[%c0_26, %c0_27] : memref<8x8xf32, #tpu.memory_space<vmem>>, vector<8x8xf32>
      %35 = tpu.iota {dimensions = array<i32: 0>} : vector<8x8xi32>
      %36 = tpu.iota {dimensions = array<i32: 1>} : vector<8x8xi32>
      %37 = arith.cmpi eq, %35, %36 : vector<8x8xi32>
      %38 = arith.extui %37 : vector<8x8xi1> to vector<8x8xi32>
      %39 = arith.sitofp %38 : vector<8x8xi32> to vector<8x8xf32>
      %40 = arith.mulf %34, %39 : vector<8x8xf32>
      %cst_28 = arith.constant dense<0.000000e+00> : vector<8xf32>
      %41 = vector.multi_reduction <add>, %40, %cst_28 [0] : vector<8x8xf32> to vector<8xf32>
      %42 = vector.shape_cast %41 : vector<8xf32> to vector<1x8xf32>
      %c0_29 = arith.constant 0 : index
      %c0_30 = arith.constant 0 : index
      %43 = vector.load %arg5[%c0_29, %c0_30] : memref<8x1xf32, #tpu.memory_space<vmem>>, vector<8x1xf32>
      %44 = vector.broadcast %43 : vector<8x1xf32> to vector<8x8xf32>
      %45 = vector.broadcast %42 : vector<1x8xf32> to vector<8x8xf32>
      %46 = arith.addf %44, %45 : vector<8x8xf32>
      %47 = arith.subf %46, %34 : vector<8x8xf32>
      %cst_31 = arith.constant 1.000000e+00 : f32
      %48 = vector.broadcast %cst_31 : f32 to vector<8x8xf32>
      %49 = arith.maximumf %47, %48 : vector<8x8xf32>
      %50 = tpu.reciprocal %49 {approx = true} : vector<8x8xf32> -> vector<8x8xf32>
      %51 = arith.mulf %34, %50 : vector<8x8xf32>
      %c0_32 = arith.constant 0 : index
      %c0_33 = arith.constant 0 : index
      %52 = vector.load %arg4[%c0_32, %c0_33] : memref<8x8xf32, #tpu.memory_space<vmem>>, vector<8x8xf32>
      tpu.vector_store %arg4[%c0_32, %c0_33], %51 {strides = array<i32>} : memref<8x8xf32, #tpu.memory_space<vmem>>, vector<8x8xf32>,
    } else {
    }
    return
  }
  func.func @transform_0(%arg0: i32) -> (i32, i32) {
    %c0_i32 = arith.constant 0 : i32
    %c0_i32_0 = arith.constant 0 : i32
    return %c0_i32, %arg0 : i32, i32
  }
  func.func @transform_1(%arg0: i32) -> (i32, i32) {
    %c0_i32 = arith.constant 0 : i32
    %c0_i32_0 = arith.constant 0 : i32
    return %c0_i32, %arg0 : i32, i32
  }
  func.func @transform_2(%arg0: i32) -> (i32, i32) {
    %c0_i32 = arith.constant 0 : i32
    %c0_i32_0 = arith.constant 0 : i32
    %c0_i32_1 = arith.constant 0 : i32
    return %c0_i32, %c0_i32_0 : i32, i32
  }
  func.func @transform_3(%arg0: i32) -> (i32, i32) {
    %c0_i32 = arith.constant 0 : i32
    %c0_i32_0 = arith.constant 0 : i32
    %c0_i32_1 = arith.constant 0 : i32
    return %c0_i32, %c0_i32_0 : i32, i32
  }
  func.func @transform_4(%arg0: i32) -> (i32, i32) {
    %c0_i32 = arith.constant 0 : i32
    %c0_i32_0 = arith.constant 0 : i32
    %c0_i32_1 = arith.constant 0 : i32
    return %c0_i32, %c0_i32_0 : i32, i32
  }
  func.func @transform_5(%arg0: i32) -> (i32, i32) {
    %c0_i32 = arith.constant 0 : i32
    %c0_i32_0 = arith.constant 0 : i32
    %c0_i32_1 = arith.constant 0 : i32
    return %c0_i32, %c0_i32_0 : i32, i32
  }
  func.func @transform_6(%arg0: i32) -> (i32, i32) {
    %c0_i32 = arith.constant 0 : i32
    %c0_i32_0 = arith.constant 0 : i32
    %c0_i32_1 = arith.constant 0 : i32
    return %c0_i32, %c0_i32_0 : i32, i32
  }
}

</mosaic_0001>

<llo_original>
// kernel: tpu_custom_call.1
$region0: #{tpu_custom_call.1}
  #allocation0 [shape = 'u32[]', space=smem, size = 0x4, offset = 0x4, fixed_abs, tag = 'smem constant byte address 0x4 - core index']
  #allocation1 [shape = 'u32[144,128]{1,0:T(1,128)}', space=vmem, size = 0x12000, scoped, tag = 'internal scratch']
  %s0 = inlined_call_operand.hbm [shape: s8[8,256], index: 0, kind: input, shape index: {}]
  %s1 = inlined_call_operand.hbm [shape: f32[2,256], index: 1, kind: input, shape index: {}]
  %s2 = inlined_call_operand.hbm [shape: f32[8,8], index: 2, kind: output, shape index: {0}]
  %s3 = inlined_call_operand.hbm [shape: f32[8,8], index: 3, kind: output, shape index: {1}]
  %s4 = inlined_call_operand.vmem [shape: f32[8,1], index: 4, kind: output, shape index: {2}]
  %s5 = inlined_call_operand.vmem [shape: f32[8,1], index: 5, kind: output, shape index: {3}]
  %s6 = inlined_call_operand.vmem [shape: f32[8,1], index: 6, kind: output, shape index: {4}]
  %7 = xla_tuple %s2, %s3, %s4, %s5, %s6
  %s8 = sld [smem:[#allocation0]]
  $region66: #{tpu_custom_call.1} parent=0
    _
  %s10 = ssub.s32 1, %s8
  %s11 = scalar_select 0, %s10, %s8
  $region1: #{tpu_custom_call.1} parent=0
    #allocation2 [shape = 'u8[2048]{0}', space=vmem, size = 0x800, scoped, tag = 'input window, operand 0, single buffered']
    #allocation3 [shape = 's32[1]{0}', space=sflag, size = 0x4, scoped, tag = 'scoped memory for tpu_custom_call.1']
    #allocation4 [shape = 's32[1]{0}', space=sflag, size = 0x4, scoped, tag = 'scoped memory for tpu_custom_call.1']
    #allocation5 [shape = 'u8[2048]{0}', space=vmem, size = 0x800, scoped, tag = 'input window, operand 1, single buffered']
    #allocation6 [shape = 's32[1]{0}', space=sflag, size = 0x4, scoped, tag = 'scoped memory for tpu_custom_call.1']
    #allocation7 [shape = 'u8[4096]{0}', space=vmem, size = 0x1000, scoped, tag = 'output window, operand 0, single buffered']
    #allocation8 [shape = 'u8[4096]{0}', space=vmem, size = 0x1000, scoped, tag = 'output window, operand 1, single buffered']
    #allocation9 [shape = 's32[1]{0}', space=sflag, size = 0x4, scoped, tag = 'scoped memory for tpu_custom_call.1']
    %12 = vsyncpa [#allocation3], 0
    %13 = vsyncpa [#allocation6], 0
    %14 = vsyncpa [#allocation4], 0
    %15 = vsyncpa [#allocation9], 0
    // Predicated region
    $region2: #{tpu_custom_call.1} parent=1 // pred_check
      _
    $region3: #{tpu_custom_call.1} parent=1 // pred_check_branch
      %17 = sbr.rel (0) target = $region5
    $region4: #{tpu_custom_call.1} parent=1 // pred_region
      %s19 = ssub.s32 64, 64
      %20 = vsyncadd [#allocation3], %s19
      %s22 = sshll.u32 [#allocation2], 4
      %s23 = int_to_ptr.vmem [resolvable:$true] %s22
      %25 = dma.hbm_to_vmem [thread:$0]  %s0, 64, %s23, [#allocation3]
    $region5: #{tpu_custom_call.1} parent=1 // pred_fallthru
      _
    // Predicated region
    $region6: #{tpu_custom_call.1} parent=1 // pred_check
      _
    $region7: #{tpu_custom_call.1} parent=1 // pred_check_branch
      %27 = sbr.rel (0) target = $region9
    $region8: #{tpu_custom_call.1} parent=1 // pred_region
      %s29 = ssub.s32 64, 64
      %30 = vsyncadd [#allocation6], %s29
      %s32 = sshll.u32 [#allocation5], 4
      %s33 = int_to_ptr.vmem [resolvable:$true] %s32
      %35 = dma.hbm_to_vmem [thread:$0]  %s1, 64, %s33, [#allocation6]
    $region9: #{tpu_custom_call.1} parent=1 // pred_fallthru
      _
    // Predicated region
    $region10: #{tpu_custom_call.1} parent=1 // pred_check
      _
    $region11: #{tpu_custom_call.1} parent=1 // pred_check_branch
      %37 = sbr.rel (0) target = $region13
    $region12: #{tpu_custom_call.1} parent=1 // pred_region
      %38 = dma.done [#allocation3], 64
    $region13: #{tpu_custom_call.1} parent=1 // pred_fallthru
      _
    // Predicated region
    $region14: #{tpu_custom_call.1} parent=1 // pred_check
      _
    $region15: #{tpu_custom_call.1} parent=1 // pred_check_branch
      %40 = sbr.rel (0) target = $region17
    $region16: #{tpu_custom_call.1} parent=1 // pred_region
      %41 = dma.done [#allocation6], 64
    $region17: #{tpu_custom_call.1} parent=1 // pred_fallthru
      _
    %p43 = scmp.eq.s32.totalorder 0, 0
    // Predicated region
    $region18: #{tpu_custom_call.1} parent=1 // pred_check
      %p44 = pneg %p43
    $region19: #{tpu_custom_call.1} parent=1 // pred_check_branch
      %46 = sbr.rel (%p44) target = $region21
    $region20: #{tpu_custom_call.1} parent=1 // pred_region
      %vm47 = vcmask 64512
      %48 = vst.msk [vmem:[#allocation7] sm:$0xff] %vm47, 0.0
      %vm49 = vcmask 7168
      %50 = vst.msk [vmem:[%s4] sm:$0xff] %vm49, 0.0
      %51 = vst.msk [vmem:[%s5] sm:$0xff] %vm49, 0.0
      %52 = vst.msk [vmem:[%s6] sm:$0xff] %vm49, 0.0
    $region21: #{tpu_custom_call.1} parent=1 // pred_fallthru
      _
    %v53 = vld [vmem:[#allocation2] sm:$0xf]
    %v54 = vunpack.c.l.s8.bf16 %v53
    %v55 = vunpack.c.l.bf16 %v54
    %v56 = vunpack.c.h.bf16 %v54
    %v57 = vld [vmem:[#allocation7] sm:$0xff]
    %v59 = vunpack.c.l.b16 %v54
    %v60 = vunpack.c.h.b16 %v54
    %v61 = vpack.c.b16 %v59, %v59
    %v62 = vpack.c.b16 %v60, %v60
    %65 = vmatprep.subr.bf16.mxu0 %v62
    %66 = vmatpush1.bf16.xpose.msra.mxu0 %v61
    %67 = vmatprep.subr.bf16.mxu0 0
    %68 = vmatpush1.bf16.xpose.msra.mxu0 0
    %69 = vmatprep.subr.bf16.mxu0 0
    %70 = vmatpush1.bf16.xpose.msra.mxu0 0
    %71 = vmatprep.subr.bf16.mxu0 0
    %72 = vmatpush1.bf16.xpose.msra.mxu0 0
    %73 = vmatprep.subr.bf16.mxu0 0
    %74 = vmatpush1.bf16.xpose.msra.mxu0 0
    %75 = vmatprep.subr.bf16.mxu0 0
    %76 = vmatpush1.bf16.xpose.msra.mxu0 0
    %77 = vmatprep.subr.bf16.mxu0 0
    %78 = vmatpush1.bf16.xpose.msra.mxu0 0
    %79 = vmatprep.subr.bf16.mxu0 0
    %80 = vmatpush1.bf16.xpose.msra.mxu0 0
    %81 = vmatprep.subr.bf16.mxu0 0
    %82 = vmatpush1.bf16.xpose.msra.mxu0 0
    %83 = vmatprep.subr.bf16.mxu0 0
    %84 = vmatpush1.bf16.xpose.msra.mxu0 0
    %85 = vmatprep.subr.bf16.mxu0 0
    %86 = vmatpush1.bf16.xpose.msra.mxu0 0
    %87 = vmatprep.subr.bf16.mxu0 0
    %88 = vmatpush1.bf16.xpose.msra.mxu0 0
    %89 = vmatprep.subr.bf16.mxu0 0
    %90 = vmatpush1.bf16.xpose.msra.mxu0 0
    %91 = vmatprep.subr.bf16.mxu0 0
    %92 = vmatpush1.bf16.xpose.msra.mxu0 0
    %93 = vmatprep.subr.bf16.mxu0 0
    %94 = vmatpush1.bf16.xpose.msra.mxu0 0
    %95 = vmatprep.subr.bf16.mxu0 0
    %96 = vmatpush1.bf16.xpose.msra.mxu0 0
    %97 = vmatprep.mubr.bf16.mxu0 %v62
    %98 = vmatmul.mubr.bf16.gmra.mrb[0].mxu0 %v61
    %v99 = vpop.f32.mrb[0].mxu0
    %v100 = vadd.f32 0.0, %v99
    %v101 = vpop.f32.mrb[0].mxu0
    %v102 = vpop.f32.mrb[0].mxu0
    %v103 = vpop.f32.mrb[0].mxu0
    %104 = vdwg.mxu0
    %v105 = vadd.f32 %v57, %v100
    %vm106 = vcmask 64512
    %107 = vst.msk [vmem:[#allocation7] sm:$0xff] %vm106, %v105
    %v108 = vld [vmem:[#allocation5] ss:$2 sm:$0x3]
    %s109 = scalar_lea.vmem [#allocation5], 1
    %v110 = vld [vmem:[%s109] ss:$2 sm:$0x3]
    %v111 = vld [vmem:[%s4] sm:$0xff]
    %v112 = vadd.f32 %v55, %v56
    %113 = vadd.xlane.f32.xlu0 %v112
    %v114 = vpop.xlane.xlu0 %113
    %v115 = vadd.f32 %v111, %v114
    %vm116 = vcmask 7168
    %117 = vst.msk [vmem:[%s4] sm:$0xff] %vm116, %v115
    %v118 = vld [vmem:[%s5] sm:$0xff]
    %v120 = vlaneseq
    %v121 = vshrl.u32 %v120, 7
    %v122 = vsub.s32 0, %v121
    %v123 = vrot.slane %v108, %v122
    %v124 = vlaneseq
    %v125 = vshrl.u32 %v124, 7
    %v126 = vsub.s32 1, %v125
    %v127 = vrot.slane %v108, %v126
    %v130 = vmul.f32 %v55, %v123
    %v131 = vmul.f32 %v56, %v127
    %v132 = vadd.f32 %v130, %v131
    %133 = vadd.xlane.f32.xlu0 %v132
    %v134 = vpop.xlane.xlu0 %133
    %v135 = vadd.f32 %v118, %v134
    %136 = vst.msk [vmem:[%s5] sm:$0xff] %vm116, %v135
    %v137 = vld [vmem:[%s6] sm:$0xff]
    %v139 = vlaneseq
    %v140 = vshrl.u32 %v139, 7
    %v141 = vsub.s32 0, %v140
    %v142 = vrot.slane %v110, %v141
    %v143 = vlaneseq
    %v144 = vshrl.u32 %v143, 7
    %v145 = vsub.s32 1, %v144
    %v146 = vrot.slane %v110, %v145
    %v149 = vmul.f32 %v55, %v142
    %v150 = vmul.f32 %v56, %v146
    %v151 = vadd.f32 %v149, %v150
    %152 = vadd.xlane.f32.xlu0 %v151
    %v153 = vpop.xlane.xlu0 %152
    %v154 = vadd.f32 %v137, %v153
    %155 = vst.msk [vmem:[%s6] sm:$0xff] %vm116, %v154
    // Predicated region
    $region22: #{tpu_custom_call.1} parent=1 // pred_check
      %p156 = pneg %p43
    $region23: #{tpu_custom_call.1} parent=1 // pred_check_branch
      %158 = sbr.rel (%p156) target = $region25
    $region24: #{tpu_custom_call.1} parent=1 // pred_region
      %v159 = vld [vmem:[#allocation7] sm:$0xff]
      %v160 = vlaneseq
      %v161 = vshrl.u32 %v160, 7
      %v162 = vlaneseq
      %v163 = vand.u32 %v162, 127
      %vm164 = vcmp.eq.s32.totalorder %v161, %v163
      %v165 = vsel %vm164, 1, 0
      %v166 = vcvt.s32.f32 %v165
      %v167 = vmul.f32 %v159, %v166
      %v168 = vsel %vm106, %v167, 0.0
      %v169 = vrot.slane %v168, 4
      %v170 = vadd.f32 %v168, %v169
      %v171 = vrot.slane %v170, 2
      %v172 = vadd.f32 %v170, %v171
      %v173 = vrot.slane %v172, 1
      %v174 = vadd.f32 %v172, %v173
      %v175 = vld [vmem:[%s4] sm:$0xff]
      %177 = vset.pattern.permute.xlu0 0
      %178 = vperm.xlu0 %177, %v175
      %v179 = vpop.permute.xlu0 %178
      %v181 = vadd.f32 %v179, %v174
      %v182 = vsub.f32 %v181, %v159
      %v183 = vmax.f32 %v182, 1.0
      %v184 = vrcp.pop %v183
      %v185 = vmul.f32 %v159, %v184
      %186 = vst.msk [vmem:[#allocation8] sm:$0xff] %vm106, %v185
    $region25: #{tpu_custom_call.1} parent=1 // pred_fallthru
      _
    // Predicated region
    $region26: #{tpu_custom_call.1} parent=1 // pred_check
      _
    $region27: #{tpu_custom_call.1} parent=1 // pred_check_branch
      %188 = sbr.rel (0) target = $region29
    $region28: #{tpu_custom_call.1} parent=1 // pred_region
      %s190 = ssub.s32 128, 128
      %191 = vsyncadd [#allocation4], %s190
      %s193 = sshll.u32 [#allocation7], 4
      %s194 = int_to_ptr.vmem [resolvable:$true] %s193
      %196 = dma.vmem_to_hbm [thread:$0]  %s194, 128, %s2, [#allocation4]
    $region29: #{tpu_custom_call.1} parent=1 // pred_fallthru
      _
    // Predicated region
    $region30: #{tpu_custom_call.1} parent=1 // pred_check
      _
    $region31: #{tpu_custom_call.1} parent=1 // pred_check_branch
      %198 = sbr.rel (0) target = $region33
    $region32: #{tpu_custom_call.1} parent=1 // pred_region
      %s200 = ssub.s32 128, 128
      %201 = vsyncadd [#allocation9], %s200
      %s203 = sshll.u32 [#allocation8], 4
      %s204 = int_to_ptr.vmem [resolvable:$true] %s203
      %206 = dma.vmem_to_hbm [thread:$0]  %s204, 128, %s3, [#allocation9]
    $region33: #{tpu_custom_call.1} parent=1 // pred_fallthru
      _
    // Predicated region
    $region34: #{tpu_custom_call.1} parent=1 // pred_check
      _
    $region35: #{tpu_custom_call.1} parent=1 // pred_check_branch
      %208 = sbr.rel (0) target = $region37
    $region36: #{tpu_custom_call.1} parent=1 // pred_region
      _
    $region37: #{tpu_custom_call.1} parent=1 // pred_fallthru
      _
    // Predicated region
    $region38: #{tpu_custom_call.1} parent=1 // pred_check
      _
    $region39: #{tpu_custom_call.1} parent=1 // pred_check_branch
      %210 = sbr.rel (0) target = $region41
    $region40: #{tpu_custom_call.1} parent=1 // pred_region
      _
    $region41: #{tpu_custom_call.1} parent=1 // pred_fallthru
      _
    // Predicated region
    $region42: #{tpu_custom_call.1} parent=1 // pred_check
      _
    $region43: #{tpu_custom_call.1} parent=1 // pred_check_branch
      %212 = sbr.rel (0) target = $region45
    $region44: #{tpu_custom_call.1} parent=1 // pred_region
      _
    $region45: #{tpu_custom_call.1} parent=1 // pred_fallthru
      _
    // Predicated region
    $region46: #{tpu_custom_call.1} parent=1 // pred_check
      _
    $region47: #{tpu_custom_call.1} parent=1 // pred_check_branch
      %214 = sbr.rel (0) target = $region49
    $region48: #{tpu_custom_call.1} parent=1 // pred_region
      %215 = dma.done [#allocation4], 128
    $region49: #{tpu_custom_call.1} parent=1 // pred_fallthru
      _
    // Predicated region
    $region50: #{tpu_custom_call.1} parent=1 // pred_check
      _
    $region51: #{tpu_custom_call.1} parent=1 // pred_check_branch
      %217 = sbr.rel (0) target = $region53
    $region52: #{tpu_custom_call.1} parent=1 // pred_region
      %218 = dma.done [#allocation9], 128
    $region53: #{tpu_custom_call.1} parent=1 // pred_fallthru
      _
    // Predicated region
    $region54: #{tpu_custom_call.1} parent=1 // pred_check
      _
    $region55: #{tpu_custom_call.1} parent=1 // pred_check_branch
      %220 = sbr.rel (0) target = $region57
    $region56: #{tpu_custom_call.1} parent=1 // pred_region
      _
    $region57: #{tpu_custom_call.1} parent=1 // pred_fallthru
      _
    // Predicated region
    $region58: #{tpu_custom_call.1} parent=1 // pred_check
      _
    $region59: #{tpu_custom_call.1} parent=1 // pred_check_branch
      %222 = sbr.rel (0) target = $region61
    $region60: #{tpu_custom_call.1} parent=1 // pred_region
      _
    $region61: #{tpu_custom_call.1} parent=1 // pred_fallthru
      _
    // Predicated region
    $region62: #{tpu_custom_call.1} parent=1 // pred_check
      _
    $region63: #{tpu_custom_call.1} parent=1 // pred_check_branch
      %224 = sbr.rel (0) target = $region65
    $region64: #{tpu_custom_call.1} parent=1 // pred_region
      _
    $region65: #{tpu_custom_call.1} parent=1 // pred_fallthru
      _
    %225 = vsyncpa [#allocation3], 1
    %226 = vsyncpa [#allocation6], 1
    %227 = vsyncpa [#allocation4], 1
    %228 = vsyncpa [#allocation9], 1

</llo_original>
